<compile_context>
chip_gen: v6e
topology: v6e:2x2x1
jax: 0.10.0
libtpu: 0.0.40
codegen_flags: <defaults>
</compile_context>

<pallas_src>
import jax
import jax.numpy as jnp
from jax.experimental import pallas as pl
from jax.experimental.pallas import tpu as pltpu


# ----------------------------- in-kernel helpers -----------------------------

def _shift_up(a):
    """a[i] <- a[i+1] along rows (axis 0); last row becomes 0."""
    return jnp.concatenate([a[1:], jnp.zeros_like(a[:1])], axis=0)


def _shift_left(a):
    """a[:, j] <- a[:, j+1] along cols (axis 1); last col becomes 0."""
    return jnp.concatenate([a[:, 1:], jnp.zeros_like(a[:, :1])], axis=1)


def _shift_down(a):
    """a[i] <- a[i-1] along rows (axis 0); row 0 becomes 0."""
    return jnp.concatenate([jnp.zeros_like(a[:1]), a[:-1]], axis=0)


def _shift_right(a):
    """a[:, j] <- a[:, j-1] along cols (axis 1); col 0 becomes 0."""
    return jnp.concatenate([jnp.zeros_like(a[:, :1]), a[:, :-1]], axis=1)


def _zero_last_col(a):
    return jnp.concatenate([a[:, :-1], jnp.zeros_like(a[:, :1])], axis=1)


def _zero_last_row(a):
    return jnp.concatenate([a[:-1], jnp.zeros_like(a[:1])], axis=0)


# ----------------------------- Pallas kernel --------------------------------

def _aconv_kernel(xq_ref, wc_ref, wl_ref, wu_ref, wul_ref, b_ref, o_ref):
    """Fused avg_pool2d(2,1) + conv3x3(stride 2, pad 1) + folded-BN + SiLU.

    xq_ref : (4, Hh, Wh, C)  parity planes of x, plane k = x[2i + k//2, 2j + k%2]
    wc_ref : (4C, c2)  weights for taps (1,1),(1,2),(2,1),(2,2)   (unshifted)
    wl_ref : (2C, c2)  weights for taps (1,0),(2,0)               (col shift)
    wu_ref : (2C, c2)  weights for taps (0,1),(0,2)               (row shift)
    wul_ref: ( C, c2)  weight  for tap  (0,0)                     (row+col shift)
    b_ref  : (1, c2)   folded BN bias
    o_ref  : (1, Hh, Wh, c2) output block (one batch element)
    """
    _, Hh, Wh, C = xq_ref.shape
    c2 = o_ref.shape[-1]
    M = Hh * Wh

    x00 = xq_ref[0]          # x[2i,   2j  ]
    x01 = xq_ref[1]          # x[2i,   2j+1]
    x10 = xq_ref[2]          # x[2i+1, 2j  ]
    x11 = xq_ref[3]          # x[2i+1, 2j+1]

    # 2x1 vertical pair-sums of the average pool (the 1/4 factor lives in w).
    r1_0 = x00 + x10                      # pooled rows 2i,   even cols
    r1_1 = x01 + x11                      # pooled rows 2i,   odd  cols
    r2_0 = x10 + _shift_up(x00)           # pooled rows 2i+1, even cols
    r2_1 = x11 + _shift_up(x01)           # pooled rows 2i+1, odd  cols

    # The 4 distinct stride-2 pooled patch classes (all full-size, unit-stride).
    p11 = r1_0 + r1_1                     # 4 * pooled[2i,   2j  ]
    p12 = r1_1 + _shift_left(r1_0)        # 4 * pooled[2i,   2j+1]
    p21 = r2_0 + r2_1                     # 4 * pooled[2i+1, 2j  ]
    p22 = r2_1 + _shift_left(r2_0)        # 4 * pooled[2i+1, 2j+1]

    # Zero the out-of-range pooled positions (the conv's zero padding at the
    # bottom/right border) so every matmul result can be added without masks.
    q12 = _zero_last_col(p12)             # pooled col Wp-1 does not exist
    q21 = _zero_last_row(p21)             # pooled row Hp-1 does not exist
    q22 = _zero_last_row(_zero_last_col(p22))

    def mm(lhs3d, w_ref):
        k = lhs3d.shape[-1]
        r = jnp.dot(lhs3d.reshape(M, k), w_ref[...],
                    preferred_element_type=jnp.float32)
        return r.reshape(Hh, Wh, c2)

    # out[i,j] = W11*p11[i,j] + W12*p12[i,j] + W21*p21[i,j] + W22*p22[i,j]
    #          + W10*p12[i,j-1] + W20*p22[i,j-1]
    #          + W01*p21[i-1,j] + W02*p22[i-1,j]
    #          + W00*p22[i-1,j-1]
    acc = mm(jnp.concatenate([p11, q12, q21, q22], axis=-1), wc_ref)
    acc = acc + _shift_right(mm(jnp.concatenate([q12, q22], axis=-1), wl_ref))
    acc = acc + _shift_down(mm(jnp.concatenate([q21, q22], axis=-1), wu_ref))
    acc = acc + _shift_down(_shift_right(mm(q22, wul_ref)))

    # Folded-BN bias + SiLU epilogue (approx reciprocal -> EUP, off the VALU path).
    z = acc + b_ref[...].reshape(1, 1, c2)
    s = z * pl.reciprocal(1.0 + jnp.exp(-z), approx=True)
    o_ref[...] = s.reshape(1, Hh, Wh, c2).astype(o_ref.dtype)


# ----------------------------- forward wrapper -------------------------------

@jax.jit
def aconv_forward(x_nchw, params):
    """AConv forward. Accepts/returns NCHW to match PyTorch."""
    B, C, H, W = x_nchw.shape
    Ho = (H - 2) // 2 + 1          # true output size (pool: H-1, conv: s2 p1 k3)
    Wo = (W - 2) // 2 + 1

    # Pad to even H/W if needed; padded rows/cols only feed dropped outputs.
    Hp, Wp = H + (H % 2), W + (W % 2)
    if (Hp, Wp) != (H, W):
        x_nchw = jnp.pad(x_nchw, ((0, 0), (0, 0), (0, Hp - H), (0, Wp - W)))
    Hh, Wh = Hp // 2, Wp // 2

    # Space-to-depth layout plumbing (single fused XLA transpose, replaces the
    # NCHW->NHWC transpose we needed anyway): (B*4, Hh, Wh, C), plane 2*rp+cp.
    xq = x_nchw.reshape(B, C, Hh, 2, Wh, 2)
    xq = jnp.transpose(xq, (0, 3, 5, 2, 4, 1)).reshape(B * 4, Hh, Wh, C)

    w_c, w_l, w_u, w_ul = params["w_c"], params["w_l"], params["w_u"], params["w_ul"]
    b_mat = params["b_mat"]        # (1, c2)
    c2 = w_c.shape[-1]

    out = pl.pallas_call(
        _aconv_kernel,
        out_shape=jax.ShapeDtypeStruct((B, Hh, Wh, c2), x_nchw.dtype),
        grid=(B,),
        in_specs=[
            pl.BlockSpec((4, Hh, Wh, C), lambda b: (b, 0, 0, 0)),
            pl.BlockSpec((4 * C, c2), lambda b: (0, 0)),
            pl.BlockSpec((2 * C, c2), lambda b: (0, 0)),
            pl.BlockSpec((2 * C, c2), lambda b: (0, 0)),
            pl.BlockSpec((C, c2), lambda b: (0, 0)),
            pl.BlockSpec((1, c2), lambda b: (0, 0)),
        ],
        out_specs=pl.BlockSpec((1, Hh, Wh, c2), lambda b: (b, 0, 0, 0)),
        compiler_params=pltpu.CompilerParams(dimension_semantics=("parallel",)),
    )(xq, w_c, w_l, w_u, w_ul, b_mat)

    out = out[:, :Ho, :Wo, :]                       # drop pad (no-op for even H, W)
    return jnp.transpose(out, (0, 3, 1, 2))         # NHWC -> NCHW


# ----------------------------- parameters (BN folded offline) ----------------

def init_aconv_params(key, c1, c2, eps=1e-5):
    kw, kg, kb, km, kv = jax.random.split(key, 5)
    W = jax.random.normal(kw, (c2, c1, 3, 3), jnp.float32) * 0.1
    gamma = jax.random.uniform(kg, (c2,), jnp.float32, 0.8, 1.2)
    beta = jax.random.normal(kb, (c2,), jnp.float32) * 0.05
    mean = jax.random.normal(km, (c2,), jnp.float32) * 0.05
    var = jax.random.uniform(kv, (c2,), jnp.float32, 0.5, 1.5)

    scale = gamma / jnp.sqrt(var + eps)
    W_eff = W * scale[:, None, None, None]          # BN folded (inference mode)
    b_eff = beta - mean * scale

    # Kernel-side layout: tap (dy, dx) -> [C_in, C_out]; the 1/4 average-pool
    # factor is folded in offline; taps are pre-concatenated along the
    # contraction dim to match the grouped matmuls in the kernel.
    Wt = jnp.transpose(W_eff, (2, 3, 1, 0)) * 0.25  # (3, 3, c1, c2)
    w_c = jnp.concatenate([Wt[1, 1], Wt[1, 2], Wt[2, 1], Wt[2, 2]], axis=0)  # (4C, c2)
    w_l = jnp.concatenate([Wt[1, 0], Wt[2, 0]], axis=0)                      # (2C, c2)
    w_u = jnp.concatenate([Wt[0, 1], Wt[0, 2]], axis=0)                      # (2C, c2)
    w_ul = Wt[0, 0]                                                          # ( C, c2)

    return {"w": W_eff, "b": b_eff,
            "w_c": w_c, "w_l": w_l, "w_u": w_u, "w_ul": w_ul,
            "b_mat": b_eff[None, :]}


# ----------------------------- pure-JAX reference ----------------------------

def aconv_reference(x_nchw, params):
    # F.avg_pool2d(x, 2, 1, 0, ceil_mode=False, count_include_pad=True)
    p = jax.lax.reduce_window(x_nchw, 0.0, jax.lax.add,
                              (1, 1, 2, 2), (1, 1, 1, 1), "VALID") * 0.25
    # Conv2d(c1, c2, 3, stride=2, padding=1, bias=False) with BN folded in.
    y = jax.lax.conv_general_dilated(
        p, params["w"], window_strides=(2, 2), padding=((1, 1), (1, 1)),
        dimension_numbers=("NCHW", "OIHW", "NCHW"))
    y = y + params["b"][None, :, None, None]
    return y * jax.nn.sigmoid(y)                    # SiLU


# ----------------------------- main -------------------------------------------

if __name__ == "__main__":
    key = jax.random.PRNGKey(0)
    kx, kp = jax.random.split(key)

    B, c1, c2, H, W = 2, 8, 32, 16, 16
    x = jax.random.normal(kx, (B, c1, H, W), jnp.float32)
    params = init_aconv_params(kp, c1, c2)

    out = jax.block_until_ready(aconv_forward(x, params))
    ref = jax.block_until_ready(aconv_reference(x, params))

    assert out.shape == ref.shape == (B, c2, H // 2, W // 2), (out.shape, ref.shape)
    if not bool(jnp.allclose(out, ref, atol=1e-2, rtol=1e-2)):
        raise AssertionError("Pallas AConv output does not match JAX reference")

    print("KERNEL_OK")
</pallas_src>

<mosaic_0001>
module attributes {stable_mosaic.version = 11 : i64} {
  func.func @_aconv_kernel(%arg0: i32, %arg1: memref<4x8x8x8xf32, #tpu.memory_space<vmem>>, %arg2: memref<32x32xf32, #tpu.memory_space<vmem>>, %arg3: memref<16x32xf32, #tpu.memory_space<vmem>>, %arg4: memref<16x32xf32, #tpu.memory_space<vmem>>, %arg5: memref<8x32xf32, #tpu.memory_space<vmem>>, %arg6: memref<1x32xf32, #tpu.memory_space<vmem>>, %arg7: memref<1x8x8x32xf32, #tpu.memory_space<vmem>>) attributes {dimension_semantics = [#tpu.dimension_semantics<parallel>], iteration_bounds = array<i64: 2>, scalar_prefetch = 0 : i64, scratch_operands = 0 : i64, tpu.core_type = #tpu.core_type<tc>, window_params = [{transform_indices = @transform_0, window_bounds = array<i64: 4, 8, 8, 8>}, {pipeline_mode = #tpu.pipeline_mode<synchronous>, transform_indices = @transform_1, window_bounds = array<i64: 32, 32>}, {pipeline_mode = #tpu.pipeline_mode<synchronous>, transform_indices = @transform_2, window_bounds = array<i64: 16, 32>}, {pipeline_mode = #tpu.pipeline_mode<synchronous>, transform_indices = @transform_3, window_bounds = array<i64: 16, 32>}, {pipeline_mode = #tpu.pipeline_mode<synchronous>, transform_indices = @transform_4, window_bounds = array<i64: 8, 32>}, {pipeline_mode = #tpu.pipeline_mode<synchronous>, transform_indices = @transform_5, window_bounds = array<i64: 1, 32>}, {transform_indices = @transform_6, window_bounds = array<i64: 1, 8, 8, 32>}]} {
    %c0 = arith.constant 0 : index
    %c0_0 = arith.constant 0 : index
    %c0_1 = arith.constant 0 : index
    %c0_2 = arith.constant 0 : index
    %0 = vector.load %arg1[%c0, %c0_0, %c0_1, %c0_2] : memref<4x8x8x8xf32, #tpu.memory_space<vmem>>, vector<1x8x8x8xf32>
    %1 = vector.shape_cast %0 : vector<1x8x8x8xf32> to vector<8x8x8xf32>
    %c1 = arith.constant 1 : index
    %c0_3 = arith.constant 0 : index
    %c0_4 = arith.constant 0 : index
    %c0_5 = arith.constant 0 : index
    %2 = vector.load %arg1[%c1, %c0_3, %c0_4, %c0_5] : memref<4x8x8x8xf32, #tpu.memory_space<vmem>>, vector<1x8x8x8xf32>
    %3 = vector.shape_cast %2 : vector<1x8x8x8xf32> to vector<8x8x8xf32>
    %c2 = arith.constant 2 : index
    %c0_6 = arith.constant 0 : index
    %c0_7 = arith.constant 0 : index
    %c0_8 = arith.constant 0 : index
    %4 = vector.load %arg1[%c2, %c0_6, %c0_7, %c0_8] : memref<4x8x8x8xf32, #tpu.memory_space<vmem>>, vector<1x8x8x8xf32>
    %5 = vector.shape_cast %4 : vector<1x8x8x8xf32> to vector<8x8x8xf32>
    %c3 = arith.constant 3 : index
    %c0_9 = arith.constant 0 : index
    %c0_10 = arith.constant 0 : index
    %c0_11 = arith.constant 0 : index
    %6 = vector.load %arg1[%c3, %c0_9, %c0_10, %c0_11] : memref<4x8x8x8xf32, #tpu.memory_space<vmem>>, vector<1x8x8x8xf32>
    %7 = vector.shape_cast %6 : vector<1x8x8x8xf32> to vector<8x8x8xf32>
    %8 = arith.addf %1, %5 : vector<8x8x8xf32>
    %9 = arith.addf %3, %7 : vector<8x8x8xf32>
    %10 = vector.extract_strided_slice %1 {offsets = [1, 0, 0], sizes = [7, 8, 8], strides = [1, 1, 1]} : vector<8x8x8xf32> to vector<7x8x8xf32>
    %cst = arith.constant 0.000000e+00 : f32
    %11 = vector.broadcast %cst : f32 to vector<1x8x8xf32>
    %12 = tpu.concatenate %10, %11 in 0 : vector<7x8x8xf32>, vector<1x8x8xf32> -> vector<8x8x8xf32>
    %13 = arith.addf %5, %12 : vector<8x8x8xf32>
    %14 = vector.extract_strided_slice %3 {offsets = [1, 0, 0], sizes = [7, 8, 8], strides = [1, 1, 1]} : vector<8x8x8xf32> to vector<7x8x8xf32>
    %cst_12 = arith.constant 0.000000e+00 : f32
    %15 = vector.broadcast %cst_12 : f32 to vector<1x8x8xf32>
    %16 = tpu.concatenate %14, %15 in 0 : vector<7x8x8xf32>, vector<1x8x8xf32> -> vector<8x8x8xf32>
    %17 = arith.addf %7, %16 : vector<8x8x8xf32>
    %18 = arith.addf %8, %9 : vector<8x8x8xf32>
    %19 = vector.extract_strided_slice %8 {offsets = [0, 1, 0], sizes = [8, 7, 8], strides = [1, 1, 1]} : vector<8x8x8xf32> to vector<8x7x8xf32>
    %cst_13 = arith.constant 0.000000e+00 : f32
    %20 = vector.broadcast %cst_13 : f32 to vector<8x1x8xf32>
    %21 = tpu.concatenate %19, %20 in 1 : vector<8x7x8xf32>, vector<8x1x8xf32> -> vector<8x8x8xf32>
    %22 = arith.addf %9, %21 : vector<8x8x8xf32>
    %23 = arith.addf %13, %17 : vector<8x8x8xf32>
    %24 = vector.extract_strided_slice %13 {offsets = [0, 1, 0], sizes = [8, 7, 8], strides = [1, 1, 1]} : vector<8x8x8xf32> to vector<8x7x8xf32>
    %cst_14 = arith.constant 0.000000e+00 : f32
    %25 = vector.broadcast %cst_14 : f32 to vector<8x1x8xf32>
    %26 = tpu.concatenate %24, %25 in 1 : vector<8x7x8xf32>, vector<8x1x8xf32> -> vector<8x8x8xf32>
    %27 = arith.addf %17, %26 : vector<8x8x8xf32>
    %28 = vector.extract_strided_slice %22 {offsets = [0, 0, 0], sizes = [8, 7, 8], strides = [1, 1, 1]} : vector<8x8x8xf32> to vector<8x7x8xf32>
    %cst_15 = arith.constant 0.000000e+00 : f32
    %29 = vector.broadcast %cst_15 : f32 to vector<8x1x8xf32>
    %30 = tpu.concatenate %28, %29 in 1 : vector<8x7x8xf32>, vector<8x1x8xf32> -> vector<8x8x8xf32>
    %31 = vector.extract_strided_slice %23 {offsets = [0, 0, 0], sizes = [7, 8, 8], strides = [1, 1, 1]} : vector<8x8x8xf32> to vector<7x8x8xf32>
    %cst_16 = arith.constant 0.000000e+00 : f32
    %32 = vector.broadcast %cst_16 : f32 to vector<1x8x8xf32>
    %33 = tpu.concatenate %31, %32 in 0 : vector<7x8x8xf32>, vector<1x8x8xf32> -> vector<8x8x8xf32>
    %34 = vector.extract_strided_slice %27 {offsets = [0, 0, 0], sizes = [8, 7, 8], strides = [1, 1, 1]} : vector<8x8x8xf32> to vector<8x7x8xf32>
    %cst_17 = arith.constant 0.000000e+00 : f32
    %35 = vector.broadcast %cst_17 : f32 to vector<8x1x8xf32>
    %36 = tpu.concatenate %34, %35 in 1 : vector<8x7x8xf32>, vector<8x1x8xf32> -> vector<8x8x8xf32>
    %37 = vector.extract_strided_slice %36 {offsets = [0, 0, 0], sizes = [7, 8, 8], strides = [1, 1, 1]} : vector<8x8x8xf32> to vector<7x8x8xf32>
    %cst_18 = arith.constant 0.000000e+00 : f32
    %38 = vector.broadcast %cst_18 : f32 to vector<1x8x8xf32>
    %39 = tpu.concatenate %37, %38 in 0 : vector<7x8x8xf32>, vector<1x8x8xf32> -> vector<8x8x8xf32>
    %40 = tpu.concatenate %18, %30, %33, %39 in 2 : vector<8x8x8xf32>, vector<8x8x8xf32>, vector<8x8x8xf32>, vector<8x8x8xf32> -> vector<8x8x32xf32>
    %41 = vector.shape_cast %40 : vector<8x8x32xf32> to vector<64x32xf32>
    %c0_19 = arith.constant 0 : index
    %c0_20 = arith.constant 0 : index
    %42 = vector.load %arg2[%c0_19, %c0_20] : memref<32x32xf32, #tpu.memory_space<vmem>>, vector<32x32xf32>
    %cst_21 = arith.constant dense<0.000000e+00> : vector<64x32xf32>
    %43 = tpu.matmul %41, %42, %cst_21 {dimension_numbers = #tpu.dot_dimension_numbers<[1], [0], [0], [1], [0, 0, 1, 1], [], []>} : vector<64x32xf32>, vector<32x32xf32>, vector<64x32xf32> -> vector<64x32xf32>
    %44 = vector.shape_cast %43 : vector<64x32xf32> to vector<8x8x32xf32>
    %45 = tpu.concatenate %30, %39 in 2 : vector<8x8x8xf32>, vector<8x8x8xf32> -> vector<8x8x16xf32>
    %46 = vector.shape_cast %45 : vector<8x8x16xf32> to vector<64x16xf32>
    %c0_22 = arith.constant 0 : index
    %c0_23 = arith.constant 0 : index
    %47 = vector.load %arg3[%c0_22, %c0_23] : memref<16x32xf32, #tpu.memory_space<vmem>>, vector<16x32xf32>
    %cst_24 = arith.constant dense<0.000000e+00> : vector<64x32xf32>
    %48 = tpu.matmul %46, %47, %cst_24 {dimension_numbers = #tpu.dot_dimension_numbers<[1], [0], [0], [1], [0, 0, 1, 1], [], []>} : vector<64x16xf32>, vector<16x32xf32>, vector<64x32xf32> -> vector<64x32xf32>
    %49 = vector.shape_cast %48 : vector<64x32xf32> to vector<8x8x32xf32>
    %cst_25 = arith.constant 0.000000e+00 : f32
    %50 = vector.broadcast %cst_25 : f32 to vector<8x1x32xf32>
    %51 = vector.extract_strided_slice %49 {offsets = [0, 0, 0], sizes = [8, 7, 32], strides = [1, 1, 1]} : vector<8x8x32xf32> to vector<8x7x32xf32>
    %52 = tpu.concatenate %50, %51 in 1 : vector<8x1x32xf32>, vector<8x7x32xf32> -> vector<8x8x32xf32>
    %53 = arith.addf %44, %52 : vector<8x8x32xf32>
    %54 = tpu.concatenate %33, %39 in 2 : vector<8x8x8xf32>, vector<8x8x8xf32> -> vector<8x8x16xf32>
    %55 = vector.shape_cast %54 : vector<8x8x16xf32> to vector<64x16xf32>
    %c0_26 = arith.constant 0 : index
    %c0_27 = arith.constant 0 : index
    %56 = vector.load %arg4[%c0_26, %c0_27] : memref<16x32xf32, #tpu.memory_space<vmem>>, vector<16x32xf32>
    %cst_28 = arith.constant dense<0.000000e+00> : vector<64x32xf32>
    %57 = tpu.matmul %55, %56, %cst_28 {dimension_numbers = #tpu.dot_dimension_numbers<[1], [0], [0], [1], [0, 0, 1, 1], [], []>} : vector<64x16xf32>, vector<16x32xf32>, vector<64x32xf32> -> vector<64x32xf32>
    %58 = vector.shape_cast %57 : vector<64x32xf32> to vector<8x8x32xf32>
    %cst_29 = arith.constant 0.000000e+00 : f32
    %59 = vector.broadcast %cst_29 : f32 to vector<1x8x32xf32>
    %60 = vector.extract_strided_slice %58 {offsets = [0, 0, 0], sizes = [7, 8, 32], strides = [1, 1, 1]} : vector<8x8x32xf32> to vector<7x8x32xf32>
    %61 = tpu.concatenate %59, %60 in 0 : vector<1x8x32xf32>, vector<7x8x32xf32> -> vector<8x8x32xf32>
    %62 = arith.addf %53, %61 : vector<8x8x32xf32>
    %63 = vector.shape_cast %39 : vector<8x8x8xf32> to vector<64x8xf32>
    %c0_30 = arith.constant 0 : index
    %c0_31 = arith.constant 0 : index
    %64 = vector.load %arg5[%c0_30, %c0_31] : memref<8x32xf32, #tpu.memory_space<vmem>>, vector<8x32xf32>
    %cst_32 = arith.constant dense<0.000000e+00> : vector<64x32xf32>
    %65 = tpu.matmul %63, %64, %cst_32 {dimension_numbers = #tpu.dot_dimension_numbers<[1], [0], [0], [1], [0, 0, 1, 1], [], []>} : vector<64x8xf32>, vector<8x32xf32>, vector<64x32xf32> -> vector<64x32xf32>
    %66 = vector.shape_cast %65 : vector<64x32xf32> to vector<8x8x32xf32>
    %cst_33 = arith.constant 0.000000e+00 : f32
    %67 = vector.broadcast %cst_33 : f32 to vector<8x1x32xf32>
    %68 = vector.extract_strided_slice %66 {offsets = [0, 0, 0], sizes = [8, 7, 32], strides = [1, 1, 1]} : vector<8x8x32xf32> to vector<8x7x32xf32>
    %69 = tpu.concatenate %67, %68 in 1 : vector<8x1x32xf32>, vector<8x7x32xf32> -> vector<8x8x32xf32>
    %cst_34 = arith.constant 0.000000e+00 : f32
    %70 = vector.broadcast %cst_34 : f32 to vector<1x8x32xf32>
    %71 = vector.extract_strided_slice %69 {offsets = [0, 0, 0], sizes = [7, 8, 32], strides = [1, 1, 1]} : vector<8x8x32xf32> to vector<7x8x32xf32>
    %72 = tpu.concatenate %70, %71 in 0 : vector<1x8x32xf32>, vector<7x8x32xf32> -> vector<8x8x32xf32>
    %73 = arith.addf %62, %72 : vector<8x8x32xf32>
    %c0_35 = arith.constant 0 : index
    %c0_36 = arith.constant 0 : index
    %74 = vector.load %arg6[%c0_35, %c0_36] : memref<1x32xf32, #tpu.memory_space<vmem>>, vector<1x32xf32>
    %75 = vector.shape_cast %74 : vector<1x32xf32> to vector<1x1x32xf32>
    %76 = vector.broadcast %75 : vector<1x1x32xf32> to vector<8x8x32xf32>
    %77 = arith.addf %73, %76 : vector<8x8x32xf32>
    %cst_37 = arith.constant 0.000000e+00 : f32
    %78 = vector.broadcast %cst_37 : f32 to vector<8x8x32xf32>
    %79 = arith.subf %78, %77 : vector<8x8x32xf32>
    %80 = math.exp %79 : vector<8x8x32xf32>
    %cst_38 = arith.constant 1.000000e+00 : f32
    %81 = vector.broadcast %cst_38 : f32 to vector<8x8x32xf32>
    %82 = arith.addf %81, %80 : vector<8x8x32xf32>
    %83 = tpu.reciprocal %82 {approx = true} : vector<8x8x32xf32> -> vector<8x8x32xf32>
    %84 = arith.mulf %77, %83 : vector<8x8x32xf32>
    %85 = vector.shape_cast %84 : vector<8x8x32xf32> to vector<1x8x8x32xf32>
    %c0_39 = arith.constant 0 : index
    %c0_40 = arith.constant 0 : index
    %c0_41 = arith.constant 0 : index
    %c0_42 = arith.constant 0 : index
    %86 = vector.load %arg7[%c0_39, %c0_40, %c0_41, %c0_42] : memref<1x8x8x32xf32, #tpu.memory_space<vmem>>, vector<1x8x8x32xf32>
    tpu.vector_store %arg7[%c0_39, %c0_40, %c0_41, %c0_42], %85 {strides = array<i32>} : memref<1x8x8x32xf32, #tpu.memory_space<vmem>>, vector<1x8x8x32xf32>,
    return
  }
  func.func @transform_0(%arg0: i32) -> (i32, i32, i32, i32) {
    %c0_i32 = arith.constant 0 : i32
    %c0_i32_0 = arith.constant 0 : i32
    %c0_i32_1 = arith.constant 0 : i32
    %c0_i32_2 = arith.constant 0 : i32
    return %arg0, %c0_i32, %c0_i32_0, %c0_i32_1 : i32, i32, i32, i32
  }
  func.func @transform_1(%arg0: i32) -> (i32, i32) {
    %c0_i32 = arith.constant 0 : i32
    %c0_i32_0 = arith.constant 0 : i32
    %c0_i32_1 = arith.constant 0 : i32
    return %c0_i32, %c0_i32_0 : i32, i32
  }
  func.func @transform_2(%arg0: i32) -> (i32, i32) {
    %c0_i32 = arith.constant 0 : i32
    %c0_i32_0 = arith.constant 0 : i32
    %c0_i32_1 = arith.constant 0 : i32
    return %c0_i32, %c0_i32_0 : i32, i32
  }
  func.func @transform_3(%arg0: i32) -> (i32, i32) {
    %c0_i32 = arith.constant 0 : i32
    %c0_i32_0 = arith.constant 0 : i32
    %c0_i32_1 = arith.constant 0 : i32
    return %c0_i32, %c0_i32_0 : i32, i32
  }
  func.func @transform_4(%arg0: i32) -> (i32, i32) {
    %c0_i32 = arith.constant 0 : i32
    %c0_i32_0 = arith.constant 0 : i32
    %c0_i32_1 = arith.constant 0 : i32
    return %c0_i32, %c0_i32_0 : i32, i32
  }
  func.func @transform_5(%arg0: i32) -> (i32, i32) {
    %c0_i32 = arith.constant 0 : i32
    %c0_i32_0 = arith.constant 0 : i32
    %c0_i32_1 = arith.constant 0 : i32
    return %c0_i32, %c0_i32_0 : i32, i32
  }
  func.func @transform_6(%arg0: i32) -> (i32, i32, i32, i32) {
    %c0_i32 = arith.constant 0 : i32
    %c0_i32_0 = arith.constant 0 : i32
    %c0_i32_1 = arith.constant 0 : i32
    %c0_i32_2 = arith.constant 0 : i32
    return %arg0, %c0_i32, %c0_i32_0, %c0_i32_1 : i32, i32, i32, i32
  }
}

</mosaic_0001>

<llo_original>
// kernel: aconv_forward.1
$region0: #{aconv_forward.1}
  #allocation0 [shape = 'u32[]', space=smem, size = 0x4, offset = 0x4, fixed_abs, tag = 'smem constant byte address 0x4 - core index']
  #allocation1 [shape = 'u32[144,128]{1,0:T(1,128)}', space=vmem, size = 0x12000, scoped, tag = 'internal scratch']
  %s0 = inlined_call_operand.vmem [shape: f32[8,8,8,8], index: 0, kind: input, shape index: {}]
  %s1 = inlined_call_operand.vmem [shape: f32[32,32], index: 1, kind: input, shape index: {}]
  %s2 = inlined_call_operand.vmem [shape: f32[16,32], index: 2, kind: input, shape index: {}]
  %s3 = inlined_call_operand.vmem [shape: f32[16,32], index: 3, kind: input, shape index: {}]
  %s4 = inlined_call_operand.vmem [shape: f32[8,32], index: 4, kind: input, shape index: {}]
  %s5 = inlined_call_operand.vmem [shape: f32[1,32], index: 5, kind: input, shape index: {}]
  %s6 = inlined_call_operand.hbm [shape: f32[2,8,8,32], index: 6, kind: output, shape index: {}]
  %s7 = sld [smem:[#allocation0]]
  $region57: #{aconv_forward.1} parent=0
    _
  %s9 = ssub.s32 1, %s7
  %s10 = scalar_select 0, %s9, %s7
  $region1: #{aconv_forward.1} parent=0
    #allocation2 [shape = 'u8[65536]{0}', space=vmem, size = 0x10000, scoped, tag = 'output window, operand 0']
    #allocation3 [shape = 's32[2]{0}', space=sflag, size = 0x8, scoped, tag = 'scoped memory for aconv_forward.1']
    %11 = vsyncpa [#allocation3], 0
    %s12 = scalar_lea.sflag [#allocation3], 1
    %13 = vsyncpa %s12, 0
    loop: start=0, step=1, limit=4
    $region2: #{aconv_forward.1} parent=1 // loop_pre_header
      _
    $region3: #{aconv_forward.1} parent=1 // loop_header
      %s15 = sphi 0, %s19
      %p16 = scmp.ge.s32.totalorder %s15, 4
      %s25 = sphi 0, %s27
      %s28 = sphi 0, %s25
      %s29 = sphi 0, %s28
      %s45 = sphi 0, %s29
      %s49 = sphi 0, %s49
      %s51 = sphi 0, %s49
      %s52 = sphi 0, %s51
      %s66 = sphi 0, %s52
      %s70 = sphi 0, %s70
      %s72 = sphi 0, %s70
      %s73 = sphi 0, %s72
      %s87 = sphi 0, %s73
      %s91 = sphi 0, %s91
      %s93 = sphi 0, %s91
      %s94 = sphi 0, %s93
      %s108 = sphi 0, %s94
      %s112 = sphi 0, %s112
      %s114 = sphi 0, %s112
      %s115 = sphi 0, %s114
      %s129 = sphi 0, %s115
      %s133 = sphi 0, %s133
      %s135 = sphi 0, %s133
      %s136 = sphi 0, %s135
      %s150 = sphi 0, %s136
      %s156 = sphi 0, %s158
      %s159 = sphi 0, %s156
      %s160 = sphi 0, %s159
      %s176 = sphi 0, %s160
    $region4: #{aconv_forward.1} parent=1 // loop_header_branch
      %18 = sbr.rel (%p16) target = $region8
    $region5: #{aconv_forward.1} parent=1 // loop_body
      %s20 = ssub.s32 %s15, 1
      %s21 = ssub.s32 %s15, 2
      %s22 = sadd.s32 %s15, 1
      %s23 = ssub.s32 %s15, %s22
      %p24 = scmp.eq.s32.totalorder %s23, 0
      %s26 = sadd.s32 %s25, 1
      %s27 = scalar_select %p24, %s25, %s26
      %p30 = pneg %p24
      %p31 = scmp.eq.s32.totalorder %s15, 1
      %p32 = por %p30, %p31
      %p33 = scmp.ne.s32.totalorder %s25, %s28
      %p34 = scmp.eq.s32.totalorder %s15, 0
      %p35 = por %p33, %p34
      %p36 = scmp.ne.s32.totalorder %s25, %s28
      %p37 = scmp.eq.s32.totalorder %s20, 1
      %p38 = por %p36, %p37
      %p39 = scmp.ne.s32.totalorder %s28, %s29
      %p40 = scmp.eq.s32.totalorder %s20, 0
      %p41 = por %p39, %p40
      %p42 = scmp.ne.s32.totalorder %s28, %s29
      %p43 = scmp.eq.s32.totalorder %s21, 1
      %p44 = por %p42, %p43
      %p46 = scmp.ne.s32.totalorder %s29, %s45
      %p47 = scmp.eq.s32.totalorder %s21, 0
      %p48 = por %p46, %p47
      %s50 = sadd.s32 %s49, 1
      %p53 = scmp.eq.s32.totalorder %s15, 1
      %p54 = scmp.ne.s32.totalorder %s49, %s51
      %p55 = scmp.eq.s32.totalorder %s15, 0
      %p56 = por %p54, %p55
      %p57 = scmp.ne.s32.totalorder %s49, %s51
      %p58 = scmp.eq.s32.totalorder %s20, 1
      %p59 = por %p57, %p58
      %p60 = scmp.ne.s32.totalorder %s51, %s52
      %p61 = scmp.eq.s32.totalorder %s20, 0
      %p62 = por %p60, %p61
      %p63 = scmp.ne.s32.totalorder %s51, %s52
      %p64 = scmp.eq.s32.totalorder %s21, 1
      %p65 = por %p63, %p64
      %p67 = scmp.ne.s32.totalorder %s52, %s66
      %p68 = scmp.eq.s32.totalorder %s21, 0
      %p69 = por %p67, %p68
      %s71 = sadd.s32 %s70, 1
      %p74 = scmp.eq.s32.totalorder %s15, 1
      %p75 = scmp.ne.s32.totalorder %s70, %s72
      %p76 = scmp.eq.s32.totalorder %s15, 0
      %p77 = por %p75, %p76
      %p78 = scmp.ne.s32.totalorder %s70, %s72
      %p79 = scmp.eq.s32.totalorder %s20, 1
      %p80 = por %p78, %p79
      %p81 = scmp.ne.s32.totalorder %s72, %s73
      %p82 = scmp.eq.s32.totalorder %s20, 0
      %p83 = por %p81, %p82
      %p84 = scmp.ne.s32.totalorder %s72, %s73
      %p85 = scmp.eq.s32.totalorder %s21, 1
      %p86 = por %p84, %p85
      %p88 = scmp.ne.s32.totalorder %s73, %s87
      %p89 = scmp.eq.s32.totalorder %s21, 0
      %p90 = por %p88, %p89
      %s92 = sadd.s32 %s91, 1
      %p95 = scmp.eq.s32.totalorder %s15, 1
      %p96 = scmp.ne.s32.totalorder %s91, %s93
      %p97 = scmp.eq.s32.totalorder %s15, 0
      %p98 = por %p96, %p97
      %p99 = scmp.ne.s32.totalorder %s91, %s93
      %p100 = scmp.eq.s32.totalorder %s20, 1
      %p101 = por %p99, %p100
      %p102 = scmp.ne.s32.totalorder %s93, %s94
      %p103 = scmp.eq.s32.totalorder %s20, 0
      %p104 = por %p102, %p103
      %p105 = scmp.ne.s32.totalorder %s93, %s94
      %p106 = scmp.eq.s32.totalorder %s21, 1
      %p107 = por %p105, %p106
      %p109 = scmp.ne.s32.totalorder %s94, %s108
      %p110 = scmp.eq.s32.totalorder %s21, 0
      %p111 = por %p109, %p110
      %s113 = sadd.s32 %s112, 1
      %p116 = scmp.eq.s32.totalorder %s15, 1
      %p117 = scmp.ne.s32.totalorder %s112, %s114
      %p118 = scmp.eq.s32.totalorder %s15, 0
      %p119 = por %p117, %p118
      %p120 = scmp.ne.s32.totalorder %s112, %s114
      %p121 = scmp.eq.s32.totalorder %s20, 1
      %p122 = por %p120, %p121
      %p123 = scmp.ne.s32.totalorder %s114, %s115
      %p124 = scmp.eq.s32.totalorder %s20, 0
      %p125 = por %p123, %p124
      %p126 = scmp.ne.s32.totalorder %s114, %s115
      %p127 = scmp.eq.s32.totalorder %s21, 1
      %p128 = por %p126, %p127
      %p130 = scmp.ne.s32.totalorder %s115, %s129
      %p131 = scmp.eq.s32.totalorder %s21, 0
      %p132 = por %p130, %p131
      %s134 = sadd.s32 %s133, 1
      %p137 = scmp.eq.s32.totalorder %s15, 1
      %p138 = scmp.ne.s32.totalorder %s133, %s135
      %p139 = scmp.eq.s32.totalorder %s15, 0
      %p140 = por %p138, %p139
      %p141 = scmp.ne.s32.totalorder %s133, %s135
      %p142 = scmp.eq.s32.totalorder %s20, 1
      %p143 = por %p141, %p142
      %p144 = scmp.ne.s32.totalorder %s135, %s136
      %p145 = scmp.eq.s32.totalorder %s20, 0
      %p146 = por %p144, %p145
      %p147 = scmp.ne.s32.totalorder %s135, %s136
      %p148 = scmp.eq.s32.totalorder %s21, 1
      %p149 = por %p147, %p148
      %p151 = scmp.ne.s32.totalorder %s136, %s150
      %p152 = scmp.eq.s32.totalorder %s21, 0
      %p153 = por %p151, %p152
      %s154 = ssub.s32 %s15, %s22
      %p155 = scmp.eq.s32.totalorder %s154, 0
      %s157 = sadd.s32 %s156, 1
      %s158 = scalar_select %p155, %s156, %s157
      %p161 = pneg %p155
      %p162 = scmp.eq.s32.totalorder %s15, 1
      %p163 = por %p161, %p162
      %p164 = scmp.ne.s32.totalorder %s156, %s159
      %p165 = scmp.eq.s32.totalorder %s15, 0
      %p166 = por %p164, %p165
      %p167 = scmp.ne.s32.totalorder %s156, %s159
      %p168 = scmp.eq.s32.totalorder %s20, 1
      %p169 = por %p167, %p168
      %p170 = scmp.ne.s32.totalorder %s159, %s160
      %p171 = scmp.eq.s32.totalorder %s20, 0
      %p172 = por %p170, %p171
      %p173 = scmp.ne.s32.totalorder %s159, %s160
      %p174 = scmp.eq.s32.totalorder %s21, 1
      %p175 = por %p173, %p174
      %p177 = scmp.ne.s32.totalorder %s160, %s176
      %p178 = scmp.eq.s32.totalorder %s21, 0
      %p179 = por %p177, %p178
      %p180 = scmp.le.s32.totalorder 1, %s15
      %p181 = scmp.lt.s32.totalorder %s15, 3
      %p182 = pnand %p180, %p181
      %p183 = pneg %p182
      // Predicated region
      $region9: #{aconv_forward.1} parent=5 // pred_check
        _
      $region10: #{aconv_forward.1} parent=5 // pred_check_branch
        %185 = sbr.rel (%p182) target = $region12
      $region11: #{aconv_forward.1} parent=5 // pred_region
        %s186 = ssub.s32 %s15, 1
        // Predicated region
        $region13: #{aconv_forward.1} parent=11 // pred_check
          %p187 = pneg %p62
        $region14: #{aconv_forward.1} parent=11 // pred_check_branch
          %189 = sbr.rel (%p187) target = $region16
        $region15: #{aconv_forward.1} parent=11 // pred_region
          _
        $region16: #{aconv_forward.1} parent=11 // pred_fallthru
          _
        // Predicated region
        $region17: #{aconv_forward.1} parent=11 // pred_check
          %p190 = pneg %p83
        $region18: #{aconv_forward.1} parent=11 // pred_check_branch
          %192 = sbr.rel (%p190) target = $region20
        $region19: #{aconv_forward.1} parent=11 // pred_region
          _
        $region20: #{aconv_forward.1} parent=11 // pred_fallthru
          _
        // Predicated region
        $region21: #{aconv_forward.1} parent=11 // pred_check
          %p193 = pneg %p104
        $region22: #{aconv_forward.1} parent=11 // pred_check_branch
          %195 = sbr.rel (%p193) target = $region24
        $region23: #{aconv_forward.1} parent=11 // pred_region
          _
        $region24: #{aconv_forward.1} parent=11 // pred_fallthru
          _
        // Predicated region
        $region25: #{aconv_forward.1} parent=11 // pred_check
          %p196 = pneg %p125
        $region26: #{aconv_forward.1} parent=11 // pred_check_branch
          %198 = sbr.rel (%p196) target = $region28
        $region27: #{aconv_forward.1} parent=11 // pred_region
          _
        $region28: #{aconv_forward.1} parent=11 // pred_fallthru
          _
        // Predicated region
        $region29: #{aconv_forward.1} parent=11 // pred_check
          %p199 = pneg %p146
        $region30: #{aconv_forward.1} parent=11 // pred_check_branch
          %201 = sbr.rel (%p199) target = $region32
        $region31: #{aconv_forward.1} parent=11 // pred_region
          _
        $region32: #{aconv_forward.1} parent=11 // pred_fallthru
          _
      $region12: #{aconv_forward.1} parent=5 // pred_fallthru
        _
      %p202 = scmp.lt.s32.totalorder %s15, 2
      // Predicated region
      $region33: #{aconv_forward.1} parent=5 // pred_check
        %p203 = pneg %p202
      $region34: #{aconv_forward.1} parent=5 // pred_check_branch
        %205 = sbr.rel (%p203) target = $region36
      $region35: #{aconv_forward.1} parent=5 // pred_region
        // Predicated region
        $region37: #{aconv_forward.1} parent=35 // pred_check
          %p206 = pneg %p35
        $region38: #{aconv_forward.1} parent=35 // pred_check_branch
          %208 = sbr.rel (%p206) target = $region40
        $region39: #{aconv_forward.1} parent=35 // pred_region
          %s209 = smul.u32 4, %s15
          %p210 = scmp.lt.s32.totalorder %s209, 7
          %s211 = scalar_select %p210, %s209, 7
          %s212 = smul.addr %s211, 8
          %s213 = smul.addr %s212, 8
          %s214 = scalar_lea.vmem %s0, %s213
          %s215 = smul.u32 4, %s15
        $region40: #{aconv_forward.1} parent=35 // pred_fallthru
          _
      $region36: #{aconv_forward.1} parent=5 // pred_fallthru
        _
      %p216 = scmp.le.s32.totalorder 1, %s15
      %p217 = scmp.lt.s32.totalorder %s15, 3
      %p218 = pnand %p216, %p217
      %p219 = pneg %p218
      // Predicated region
      $region41: #{aconv_forward.1} parent=5 // pred_check
        _
      $region42: #{aconv_forward.1} parent=5 // pred_check_branch
        %221 = sbr.rel (%p218) target = $region44
      $region43: #{aconv_forward.1} parent=5 // pred_region
        %s222 = ssub.s32 %s15, 1
        %s223 = smul.u32 4, %s20
        %p224 = scmp.lt.s32.totalorder %s223, 7
        %s225 = scalar_select %p224, %s223, 7
        %s226 = smul.addr %s225, 8
        %s227 = smul.addr %s226, 8
        %s228 = scalar_lea.vmem %s0, %s227
        %p229 = pneg %p41
        %p230 = pneg %p38
        %p231 = pneg %p62
        %p232 = pneg %p59
        %p233 = pneg %p83
        %p234 = pneg %p80
        %p235 = pneg %p104
        %p236 = pneg %p101
        %p237 = pneg %p125
        %p238 = pneg %p122
        %p239 = pneg %p146
        %p240 = pneg %p143
        %p241 = pneg %p172
        %p242 = pneg %p169
        %s243 = sand.u32 %s159, 1
        %s244 = scalar_lea.sflag [#allocation3], %s243
        %s245 = sand.u32 %s159, 1
        %s246 = smul.addr %s245, 64
        %s247 = scalar_lea.vmem [#allocation2], %s246
        %s248 = smul.u32 4, %s20
        %p249 = scmp.lt.s32.totalorder %s248, 7
        %s250 = scalar_select %p249, %s248, 7
        %s251 = smul.addr %s250, 8
        %s252 = smul.addr %s251, 8
        %s253 = scalar_lea.vmem %s0, %s252
        %s254 = smul.u32 4, %s20
        %v255 = vld [vmem:[%s253] sm:$0xff]
        %v256 = vld [vmem:[%s253 + $0x8] sm:$0xff]
        %v257 = vld [vmem:[%s253 + $0x10] sm:$0xff]
        %v258 = vld [vmem:[%s253 + $0x18] sm:$0xff]
        %v259 = vld [vmem:[%s253 + $0x20] sm:$0xff]
        %v260 = vld [vmem:[%s253 + $0x28] sm:$0xff]
        %v261 = vld [vmem:[%s253 + $0x30] sm:$0xff]
        %v262 = vld [vmem:[%s253 + $0x38] sm:$0xff]
        %s263 = scalar_lea.vmem %s253, 64
        %v264 = vld [vmem:[%s263] sm:$0xff]
        %v265 = vld [vmem:[%s263 + $0x8] sm:$0xff]
        %v266 = vld [vmem:[%s263 + $0x10] sm:$0xff]
        %v267 = vld [vmem:[%s263 + $0x18] sm:$0xff]
        %v268 = vld [vmem:[%s263 + $0x20] sm:$0xff]
        %v269 = vld [vmem:[%s263 + $0x28] sm:$0xff]
        %v270 = vld [vmem:[%s263 + $0x30] sm:$0xff]
        %v271 = vld [vmem:[%s263 + $0x38] sm:$0xff]
        %s272 = scalar_lea.vmem %s253, 128
        %v273 = vld [vmem:[%s272] sm:$0xff]
        %v274 = vld [vmem:[%s272 + $0x8] sm:$0xff]
        %v275 = vld [vmem:[%s272 + $0x10] sm:$0xff]
        %v276 = vld [vmem:[%s272 + $0x18] sm:$0xff]
        %v277 = vld [vmem:[%s272 + $0x20] sm:$0xff]
        %v278 = vld [vmem:[%s272 + $0x28] sm:$0xff]
        %v279 = vld [vmem:[%s272 + $0x30] sm:$0xff]
        %v280 = vld [vmem:[%s272 + $0x38] sm:$0xff]
        %s281 = scalar_lea.vmem %s253, 192
        %v282 = vld [vmem:[%s281] sm:$0xff]
        %v283 = vld [vmem:[%s281 + $0x8] sm:$0xff]
        %v284 = vld [vmem:[%s281 + $0x10] sm:$0xff]
        %v285 = vld [vmem:[%s281 + $0x18] sm:$0xff]
        %v286 = vld [vmem:[%s281 + $0x20] sm:$0xff]
        %v287 = vld [vmem:[%s281 + $0x28] sm:$0xff]
        %v288 = vld [vmem:[%s281 + $0x30] sm:$0xff]
        %v289 = vld [vmem:[%s281 + $0x38] sm:$0xff]
        %v290 = vadd.f32 %v255, %v273
        %v291 = vadd.f32 %v256, %v274
        %v292 = vadd.f32 %v257, %v275
        %v293 = vadd.f32 %v258, %v276
        %v294 = vadd.f32 %v259, %v277
        %v295 = vadd.f32 %v260, %v278
        %v296 = vadd.f32 %v261, %v279
        %v297 = vadd.f32 %v262, %v280
        %v298 = vadd.f32 %v264, %v282
        %v299 = vadd.f32 %v265, %v283
        %v300 = vadd.f32 %v266, %v284
        %v301 = vadd.f32 %v267, %v285
        %v302 = vadd.f32 %v268, %v286
        %v303 = vadd.f32 %v269, %v287
        %v304 = vadd.f32 %v270, %v288
        %v305 = vadd.f32 %v271, %v289
        %v306 = vadd.f32 %v273, %v256
        %v307 = vadd.f32 %v274, %v257
        %v308 = vadd.f32 %v275, %v258
        %v309 = vadd.f32 %v276, %v259
        %v310 = vadd.f32 %v277, %v260
        %v311 = vadd.f32 %v278, %v261
        %v312 = vadd.f32 %v279, %v262
        %v313 = vadd.f32 %v282, %v265
        %v314 = vadd.f32 %v283, %v266
        %v315 = vadd.f32 %v284, %v267
        %v316 = vadd.f32 %v285, %v268
        %v317 = vadd.f32 %v286, %v269
        %v318 = vadd.f32 %v287, %v270
        %v319 = vadd.f32 %v288, %v271
        %v320 = vadd.f32 %v290, %v298
        %v321 = vadd.f32 %v291, %v299
        %v322 = vadd.f32 %v292, %v300
        %v323 = vadd.f32 %v293, %v301
        %v324 = vadd.f32 %v294, %v302
        %v325 = vadd.f32 %v295, %v303
        %v326 = vadd.f32 %v296, %v304
        %v327 = vadd.f32 %v297, %v305
        %v336 = vrot.slane %v290, 1
        %v337 = vrot.slane %v291, 1
        %v338 = vrot.slane %v292, 1
        %v339 = vrot.slane %v293, 1
        %v340 = vrot.slane %v294, 1
        %v341 = vrot.slane %v295, 1
        %v342 = vrot.slane %v296, 1
        %v343 = vrot.slane %v297, 1
        %vm352 = vcmask 1046528
        %v353 = vsel %vm352, %v336, 0.0
        %v354 = vsel %vm352, %v337, 0.0
        %v355 = vsel %vm352, %v338, 0.0
        %v356 = vsel %vm352, %v339, 0.0
        %v357 = vsel %vm352, %v340, 0.0
        %v358 = vsel %vm352, %v341, 0.0
        %v359 = vsel %vm352, %v342, 0.0
        %v360 = vsel %vm352, %v343, 0.0
        %v361 = vadd.f32 %v298, %v353
        %v362 = vadd.f32 %v299, %v354
        %v363 = vadd.f32 %v300, %v355
        %v364 = vadd.f32 %v301, %v356
        %v365 = vadd.f32 %v302, %v357
        %v366 = vadd.f32 %v303, %v358
        %v367 = vadd.f32 %v304, %v359
        %v368 = vadd.f32 %v305, %v360
        %v369 = vadd.f32 %v306, %v313
        %v370 = vadd.f32 %v307, %v314
        %v371 = vadd.f32 %v308, %v315
        %v372 = vadd.f32 %v309, %v316
        %v373 = vadd.f32 %v310, %v317
        %v374 = vadd.f32 %v311, %v318
        %v375 = vadd.f32 %v312, %v319
        %v383 = vrot.slane %v306, 1
        %v384 = vrot.slane %v307, 1
        %v385 = vrot.slane %v308, 1
        %v386 = vrot.slane %v309, 1
        %v387 = vrot.slane %v310, 1
        %v388 = vrot.slane %v311, 1
        %v389 = vrot.slane %v312, 1
        %v397 = vsel %vm352, %v383, 0.0
        %v398 = vsel %vm352, %v384, 0.0
        %v399 = vsel %vm352, %v385, 0.0
        %v400 = vsel %vm352, %v386, 0.0
        %v401 = vsel %vm352, %v387, 0.0
        %v402 = vsel %vm352, %v388, 0.0
        %v403 = vsel %vm352, %v389, 0.0
        %v404 = vadd.f32 %v313, %v397
        %v405 = vadd.f32 %v314, %v398
        %v406 = vadd.f32 %v315, %v399
        %v407 = vadd.f32 %v316, %v400
        %v408 = vadd.f32 %v317, %v401
        %v409 = vadd.f32 %v318, %v402
        %v410 = vadd.f32 %v319, %v403
        %v411 = vsel %vm352, %v361, 0.0
        %v412 = vsel %vm352, %v362, 0.0
        %v413 = vsel %vm352, %v363, 0.0
        %v414 = vsel %vm352, %v364, 0.0
        %v415 = vsel %vm352, %v365, 0.0
        %v416 = vsel %vm352, %v366, 0.0
        %v417 = vsel %vm352, %v367, 0.0
        %v418 = vsel %vm352, %v368, 0.0
        %v419 = vsel %vm352, %v404, 0.0
        %v420 = vsel %vm352, %v405, 0.0
        %v421 = vsel %vm352, %v406, 0.0
        %v422 = vsel %vm352, %v407, 0.0
        %v423 = vsel %vm352, %v408, 0.0
        %v424 = vsel %vm352, %v409, 0.0
        %v425 = vsel %vm352, %v410, 0.0
        %434 = vrot.lane.b32.xlu0 %v411, 8
        %v435 = vpop.permute.xlu0 %434
        %436 = vrot.lane.b32.xlu0 %v412, 8
        %v437 = vpop.permute.xlu0 %436
        %438 = vrot.lane.b32.xlu0 %v413, 8
        %v439 = vpop.permute.xlu0 %438
        %440 = vrot.lane.b32.xlu0 %v414, 8
        %v441 = vpop.permute.xlu0 %440
        %442 = vrot.lane.b32.xlu0 %v415, 8
        %v443 = vpop.permute.xlu0 %442
        %444 = vrot.lane.b32.xlu0 %v416, 8
        %v445 = vpop.permute.xlu0 %444
        %446 = vrot.lane.b32.xlu0 %v417, 8
        %v447 = vpop.permute.xlu0 %446
        %448 = vrot.lane.b32.xlu0 %v418, 8
        %v449 = vpop.permute.xlu0 %448
        %466 = vrot.lane.b32.xlu0 %v369, 16
        %v467 = vpop.permute.xlu0 %466
        %468 = vrot.lane.b32.xlu0 %v370, 16
        %v469 = vpop.permute.xlu0 %468
        %470 = vrot.lane.b32.xlu0 %v371, 16
        %v471 = vpop.permute.xlu0 %470
        %472 = vrot.lane.b32.xlu0 %v372, 16
        %v473 = vpop.permute.xlu0 %472
        %474 = vrot.lane.b32.xlu0 %v373, 16
        %v475 = vpop.permute.xlu0 %474
        %476 = vrot.lane.b32.xlu0 %v374, 16
        %v477 = vpop.permute.xlu0 %476
        %478 = vrot.lane.b32.xlu0 %v375, 16
        %v479 = vpop.permute.xlu0 %478
        %480 = vrot.lane.b32.xlu0 0.0, 16
        %v481 = vpop.permute.xlu0 %480
        %497 = vrot.lane.b32.xlu0 %v419, 24
        %v498 = vpop.permute.xlu0 %497
        %499 = vrot.lane.b32.xlu0 %v420, 24
        %v500 = vpop.permute.xlu0 %499
        %501 = vrot.lane.b32.xlu0 %v421, 24
        %v502 = vpop.permute.xlu0 %501
        %503 = vrot.lane.b32.xlu0 %v422, 24
        %v504 = vpop.permute.xlu0 %503
        %505 = vrot.lane.b32.xlu0 %v423, 24
        %v506 = vpop.permute.xlu0 %505
        %507 = vrot.lane.b32.xlu0 %v424, 24
        %v508 = vpop.permute.xlu0 %507
        %509 = vrot.lane.b32.xlu0 %v425, 24
        %v510 = vpop.permute.xlu0 %509
        %511 = vrot.lane.b32.xlu0 0.0, 24
        %v512 = vpop.permute.xlu0 %511
        %vm521 = vcmask 64512
        %v522 = vsel %vm521, %v320, %v435
        %v523 = vsel %vm521, %v321, %v437
        %v524 = vsel %vm521, %v322, %v439
        %v525 = vsel %vm521, %v323, %v441
        %v526 = vsel %vm521, %v324, %v443
        %v527 = vsel %vm521, %v325, %v445
        %v528 = vsel %vm521, %v326, %v447
        %v529 = vsel %vm521, %v327, %v449
        %vm530 = vcmask 130048
        %v531 = vsel %vm530, %v522, %v467
        %v532 = vsel %vm530, %v523, %v469
        %v533 = vsel %vm530, %v524, %v471
        %v534 = vsel %vm530, %v525, %v473
        %v535 = vsel %vm530, %v526, %v475
        %v536 = vsel %vm530, %v527, %v477
        %v537 = vsel %vm530, %v528, %v479
        %v538 = vsel %vm530, %v529, %v481
        %vm539 = vcmask 195584
        %v540 = vsel %vm539, %v531, %v498
        %v541 = vsel %vm539, %v532, %v500
        %v542 = vsel %vm539, %v533, %v502
        %v543 = vsel %vm539, %v534, %v504
        %v544 = vsel %vm539, %v535, %v506
        %v545 = vsel %vm539, %v536, %v508
        %v546 = vsel %vm539, %v537, %v510
        %v547 = vsel %vm539, %v538, %v512
        %v548 = vld [vmem:[%s1] sm:$0xff]
        %v549 = vld [vmem:[%s1 + $0x8] sm:$0xff]
        %v550 = vld [vmem:[%s1 + $0x10] sm:$0xff]
        %v551 = vld [vmem:[%s1 + $0x18] sm:$0xff]
        %vm552 = vcmask 261120
        %v554 = vsel %vm552, %v540, 0
        %v557 = vsel %vm552, %v541, 0
        %v560 = vsel %vm552, %v542, 0
        %v563 = vsel %vm552, %v543, 0
        %v566 = vsel %vm552, %v544, 0
        %v569 = vsel %vm552, %v545, 0
        %v572 = vsel %vm552, %v546, 0
        %v575 = vsel %vm552, %v547, 0
        %577 = vmatprep.subr.mxu0 0.0
        %578 = vmatpush1.msra.mxu0 0.0
        %579 = vmatprep.subr.mxu0 0.0
        %580 = vmatpush1.msra.mxu0 0.0
        %581 = vmatprep.subr.mxu0 0.0
        %582 = vmatpush1.msra.mxu0 0.0
        %583 = vmatprep.subr.mxu0 0.0
        %584 = vmatpush1.msra.mxu0 0.0
        %585 = vmatprep.subr.mxu0 0.0
        %586 = vmatpush1.msra.mxu0 0.0
        %587 = vmatprep.subr.mxu0 0.0
        %588 = vmatpush1.msra.mxu0 0.0
        %589 = vmatprep.subr.mxu0 0.0
        %590 = vmatpush1.msra.mxu0 0.0
        %591 = vmatprep.subr.mxu0 0.0
        %592 = vmatpush1.msra.mxu0 0.0
        %593 = vmatprep.subr.mxu0 0.0
        %594 = vmatpush1.msra.mxu0 0.0
        %595 = vmatprep.subr.mxu0 0.0
        %596 = vmatpush1.msra.mxu0 0.0
        %597 = vmatprep.subr.mxu0 0.0
        %598 = vmatpush1.msra.mxu0 0.0
        %599 = vmatprep.subr.mxu0 0.0
        %600 = vmatpush1.msra.mxu0 0.0
        %601 = vmatprep.subr.mxu0 0.0
        %602 = vmatpush1.msra.mxu0 %v551
        %603 = vmatprep.subr.mxu0 0.0
        %604 = vmatpush1.msra.mxu0 %v550
        %605 = vmatprep.subr.mxu0 0.0
        %606 = vmatpush1.msra.mxu0 %v549
        %607 = vmatprep.subr.mxu0 0.0
        %608 = vmatpush1.msra.mxu0 %v548
        %609 = vmatprep.subr.mxu0 0.0
        %610 = vmatpush2.msra.mxu0 0.0
        %611 = vmatprep.subr.mxu0 0.0
        %612 = vmatpush2.msra.mxu0 0.0
        %613 = vmatprep.subr.mxu0 0.0
        %614 = vmatpush2.msra.mxu0 0.0
        %615 = vmatprep.subr.mxu0 0.0
        %616 = vmatpush2.msra.mxu0 0.0
        %617 = vmatprep.subr.mxu0 0.0
        %618 = vmatpush2.msra.mxu0 0.0
        %619 = vmatprep.subr.mxu0 0.0
        %620 = vmatpush2.msra.mxu0 0.0
        %621 = vmatprep.subr.mxu0 0.0
        %622 = vmatpush2.msra.mxu0 0.0
        %623 = vmatprep.subr.mxu0 0.0
        %624 = vmatpush2.msra.mxu0 0.0
        %625 = vmatprep.subr.mxu0 0.0
        %626 = vmatpush2.msra.mxu0 0.0
        %627 = vmatprep.subr.mxu0 0.0
        %628 = vmatpush2.msra.mxu0 0.0
        %629 = vmatprep.subr.mxu0 0.0
        %630 = vmatpush2.msra.mxu0 0.0
        %631 = vmatprep.subr.mxu0 0.0
        %632 = vmatpush2.msra.mxu0 0.0
        %633 = vmatprep.subr.mxu0 0.0
        %634 = vmatpush2.msra.mxu0 0.0
        %635 = vmatprep.subr.mxu0 0.0
        %636 = vmatpush2.msra.mxu0 0.0
        %637 = vmatprep.subr.mxu0 0.0
        %638 = vmatpush2.msra.mxu0 0.0
        %639 = vmatprep.subr.mxu0 0.0
        %640 = vmatpush2.msra.mxu0 0.0
        %641 = vmatprep.mubr.f32.mxu0 0.0
        %642 = vmatmul.mubr.f32.gmra.mxu0 %v554
        %v643 = vpop.f32.mrf.mxu0
        %v644 = vadd.f32 0.0, %v643
        %v645 = vpop.f32.mrf.mxu0
        %646 = vmatprep.mubr.f32.mxu0 0.0
        %647 = vmatmul.mubr.f32.gmra.mxu0 %v557
        %v648 = vpop.f32.mrf.mxu0
        %v649 = vadd.f32 0.0, %v648
        %v650 = vpop.f32.mrf.mxu0
        %651 = vmatprep.mubr.f32.mxu0 0.0
        %652 = vmatmul.mubr.f32.gmra.mxu0 %v560
        %v653 = vpop.f32.mrf.mxu0
        %v654 = vadd.f32 0.0, %v653
        %v655 = vpop.f32.mrf.mxu0
        %656 = vmatprep.mubr.f32.mxu0 0.0
        %657 = vmatmul.mubr.f32.gmra.mxu0 %v563
        %v658 = vpop.f32.mrf.mxu0
        %v659 = vadd.f32 0.0, %v658
        %v660 = vpop.f32.mrf.mxu0
        %661 = vmatprep.mubr.f32.mxu0 0.0
        %662 = vmatmul.mubr.f32.gmra.mxu0 %v566
        %v663 = vpop.f32.mrf.mxu0
        %v664 = vadd.f32 0.0, %v663
        %v665 = vpop.f32.mrf.mxu0
        %666 = vmatprep.mubr.f32.mxu0 0.0
        %667 = vmatmul.mubr.f32.gmra.mxu0 %v569
        %v668 = vpop.f32.mrf.mxu0
        %v669 = vadd.f32 0.0, %v668
        %v670 = vpop.f32.mrf.mxu0
        %671 = vmatprep.mubr.f32.mxu0 0.0
        %672 = vmatmul.mubr.f32.gmra.mxu0 %v572
        %v673 = vpop.f32.mrf.mxu0
        %v674 = vadd.f32 0.0, %v673
        %v675 = vpop.f32.mrf.mxu0
        %676 = vmatprep.mubr.f32.mxu0 0.0
        %677 = vmatmul.mubr.f32.gmra.mxu0 %v575
        %v678 = vpop.f32.mrf.mxu0
        %v679 = vadd.f32 0.0, %v678
        %v680 = vpop.f32.mrf.mxu0
        %681 = vdwg.mxu0
        %682 = vrot.lane.b32.xlu0 %v419, 8
        %v683 = vpop.permute.xlu0 %682
        %684 = vrot.lane.b32.xlu0 %v420, 8
        %v685 = vpop.permute.xlu0 %684
        %686 = vrot.lane.b32.xlu0 %v421, 8
        %v687 = vpop.permute.xlu0 %686
        %688 = vrot.lane.b32.xlu0 %v422, 8
        %v689 = vpop.permute.xlu0 %688
        %690 = vrot.lane.b32.xlu0 %v423, 8
        %v691 = vpop.permute.xlu0 %690
        %692 = vrot.lane.b32.xlu0 %v424, 8
        %v693 = vpop.permute.xlu0 %692
        %694 = vrot.lane.b32.xlu0 %v425, 8
        %v695 = vpop.permute.xlu0 %694
        %696 = vrot.lane.b32.xlu0 0.0, 8
        %v697 = vpop.permute.xlu0 %696
        %v706 = vsel %vm521, %v411, %v683
        %v707 = vsel %vm521, %v412, %v685
        %v708 = vsel %vm521, %v413, %v687
        %v709 = vsel %vm521, %v414, %v689
        %v710 = vsel %vm521, %v415, %v691
        %v711 = vsel %vm521, %v416, %v693
        %v712 = vsel %vm521, %v417, %v695
        %v713 = vsel %vm521, %v418, %v697
        %v714 = vld [vmem:[%s2] sm:$0xff]
        %v715 = vld [vmem:[%s2 + $0x8] sm:$0xff]
        %v717 = vsel %vm530, %v706, 0
        %v720 = vsel %vm530, %v707, 0
        %v723 = vsel %vm530, %v708, 0
        %v726 = vsel %vm530, %v709, 0
        %v729 = vsel %vm530, %v710, 0
        %v732 = vsel %vm530, %v711, 0
        %v735 = vsel %vm530, %v712, 0
        %v738 = vsel %vm530, %v713, 0
        %740 = vmatprep.subr.mxu0 0.0
        %741 = vmatpush1.msra.mxu0 0.0
        %742 = vmatprep.subr.mxu0 0.0
        %743 = vmatpush1.msra.mxu0 0.0
        %744 = vmatprep.subr.mxu0 0.0
        %745 = vmatpush1.msra.mxu0 0.0
        %746 = vmatprep.subr.mxu0 0.0
        %747 = vmatpush1.msra.mxu0 0.0
        %748 = vmatprep.subr.mxu0 0.0
        %749 = vmatpush1.msra.mxu0 0.0
        %750 = vmatprep.subr.mxu0 0.0
        %751 = vmatpush1.msra.mxu0 0.0
        %752 = vmatprep.subr.mxu0 0.0
        %753 = vmatpush1.msra.mxu0 0.0
        %754 = vmatprep.subr.mxu0 0.0
        %755 = vmatpush1.msra.mxu0 0.0
        %756 = vmatprep.subr.mxu0 0.0
        %757 = vmatpush1.msra.mxu0 0.0
        %758 = vmatprep.subr.mxu0 0.0
        %759 = vmatpush1.msra.mxu0 0.0
        %760 = vmatprep.subr.mxu0 0.0
        %761 = vmatpush1.msra.mxu0 0.0
        %762 = vmatprep.subr.mxu0 0.0
        %763 = vmatpush1.msra.mxu0 0.0
        %764 = vmatprep.subr.mxu0 0.0
        %765 = vmatpush1.msra.mxu0 0.0
        %766 = vmatprep.subr.mxu0 0.0
        %767 = vmatpush1.msra.mxu0 0.0
        %768 = vmatprep.subr.mxu0 0.0
        %769 = vmatpush1.msra.mxu0 %v715
        %770 = vmatprep.subr.mxu0 0.0
        %771 = vmatpush1.msra.mxu0 %v714
        %772 = vmatprep.subr.mxu0 0.0
        %773 = vmatpush2.msra.mxu0 0.0
        %774 = vmatprep.subr.mxu0 0.0
        %775 = vmatpush2.msra.mxu0 0.0
        %776 = vmatprep.subr.mxu0 0.0
        %777 = vmatpush2.msra.mxu0 0.0
        %778 = vmatprep.subr.mxu0 0.0
        %779 = vmatpush2.msra.mxu0 0.0
        %780 = vmatprep.subr.mxu0 0.0
        %781 = vmatpush2.msra.mxu0 0.0
        %782 = vmatprep.subr.mxu0 0.0
        %783 = vmatpush2.msra.mxu0 0.0
        %784 = vmatprep.subr.mxu0 0.0
        %785 = vmatpush2.msra.mxu0 0.0
        %786 = vmatprep.subr.mxu0 0.0
        %787 = vmatpush2.msra.mxu0 0.0
        %788 = vmatprep.subr.mxu0 0.0
        %789 = vmatpush2.msra.mxu0 0.0
        %790 = vmatprep.subr.mxu0 0.0
        %791 = vmatpush2.msra.mxu0 0.0
        %792 = vmatprep.subr.mxu0 0.0
        %793 = vmatpush2.msra.mxu0 0.0
        %794 = vmatprep.subr.mxu0 0.0
        %795 = vmatpush2.msra.mxu0 0.0
        %796 = vmatprep.subr.mxu0 0.0
        %797 = vmatpush2.msra.mxu0 0.0
        %798 = vmatprep.subr.mxu0 0.0
        %799 = vmatpush2.msra.mxu0 0.0
        %800 = vmatprep.subr.mxu0 0.0
        %801 = vmatpush2.msra.mxu0 0.0
        %802 = vmatprep.subr.mxu0 0.0
        %803 = vmatpush2.msra.mxu0 0.0
        %804 = vmatprep.mubr.f32.mxu0 0.0
        %805 = vmatmul.mubr.f32.gmra.mxu0 %v717
        %v806 = vpop.f32.mrf.mxu0
        %v807 = vadd.f32 0.0, %v806
        %v808 = vpop.f32.mrf.mxu0
        %809 = vmatprep.mubr.f32.mxu0 0.0
        %810 = vmatmul.mubr.f32.gmra.mxu0 %v720
        %v811 = vpop.f32.mrf.mxu0
        %v812 = vadd.f32 0.0, %v811
        %v813 = vpop.f32.mrf.mxu0
        %814 = vmatprep.mubr.f32.mxu0 0.0
        %815 = vmatmul.mubr.f32.gmra.mxu0 %v723
        %v816 = vpop.f32.mrf.mxu0
        %v817 = vadd.f32 0.0, %v816
        %v818 = vpop.f32.mrf.mxu0
        %819 = vmatprep.mubr.f32.mxu0 0.0
        %820 = vmatmul.mubr.f32.gmra.mxu0 %v726
        %v821 = vpop.f32.mrf.mxu0
        %v822 = vadd.f32 0.0, %v821
        %v823 = vpop.f32.mrf.mxu0
        %824 = vmatprep.mubr.f32.mxu0 0.0
        %825 = vmatmul.mubr.f32.gmra.mxu0 %v729
        %v826 = vpop.f32.mrf.mxu0
        %v827 = vadd.f32 0.0, %v826
        %v828 = vpop.f32.mrf.mxu0
        %829 = vmatprep.mubr.f32.mxu0 0.0
        %830 = vmatmul.mubr.f32.gmra.mxu0 %v732
        %v831 = vpop.f32.mrf.mxu0
        %v832 = vadd.f32 0.0, %v831
        %v833 = vpop.f32.mrf.mxu0
        %834 = vmatprep.mubr.f32.mxu0 0.0
        %835 = vmatmul.mubr.f32.gmra.mxu0 %v735
        %v836 = vpop.f32.mrf.mxu0
        %v837 = vadd.f32 0.0, %v836
        %v838 = vpop.f32.mrf.mxu0
        %839 = vmatprep.mubr.f32.mxu0 0.0
        %840 = vmatmul.mubr.f32.gmra.mxu0 %v738
        %v841 = vpop.f32.mrf.mxu0
        %v842 = vadd.f32 0.0, %v841
        %v843 = vpop.f32.mrf.mxu0
        %844 = vdwg.mxu0
        %v853 = vrot.slane %v807, 7
        %v854 = vrot.slane %v812, 7
        %v855 = vrot.slane %v817, 7
        %v856 = vrot.slane %v822, 7
        %v857 = vrot.slane %v827, 7
        %v858 = vrot.slane %v832, 7
        %v859 = vrot.slane %v837, 7
        %v860 = vrot.slane %v842, 7
        %vm869 = vcmask 1040384
        %v870 = vsel %vm869, 0.0, %v853
        %v871 = vsel %vm869, 0.0, %v854
        %v872 = vsel %vm869, 0.0, %v855
        %v873 = vsel %vm869, 0.0, %v856
        %v874 = vsel %vm869, 0.0, %v857
        %v875 = vsel %vm869, 0.0, %v858
        %v876 = vsel %vm869, 0.0, %v859
        %v877 = vsel %vm869, 0.0, %v860
        %v878 = vadd.f32 %v644, %v870
        %v879 = vadd.f32 %v649, %v871
        %v880 = vadd.f32 %v654, %v872
        %v881 = vadd.f32 %v659, %v873
        %v882 = vadd.f32 %v664, %v874
        %v883 = vadd.f32 %v669, %v875
        %v884 = vadd.f32 %v674, %v876
        %v885 = vadd.f32 %v679, %v877
        %v886 = vsel %vm521, %v369, %v683
        %v887 = vsel %vm521, %v370, %v685
        %v888 = vsel %vm521, %v371, %v687
        %v889 = vsel %vm521, %v372, %v689
        %v890 = vsel %vm521, %v373, %v691
        %v891 = vsel %vm521, %v374, %v693
        %v892 = vsel %vm521, %v375, %v695
        %v893 = vsel %vm521, 0.0, %v697
        %v894 = vld [vmem:[%s3] sm:$0xff]
        %v895 = vld [vmem:[%s3 + $0x8] sm:$0xff]
        %v897 = vsel %vm530, %v886, 0
        %v900 = vsel %vm530, %v887, 0
        %v903 = vsel %vm530, %v888, 0
        %v906 = vsel %vm530, %v889, 0
        %v909 = vsel %vm530, %v890, 0
        %v912 = vsel %vm530, %v891, 0
        %v915 = vsel %vm530, %v892, 0
        %v918 = vsel %vm530, %v893, 0
        %920 = vmatprep.subr.mxu0 0.0
        %921 = vmatpush1.msra.mxu0 0.0
        %922 = vmatprep.subr.mxu0 0.0
        %923 = vmatpush1.msra.mxu0 0.0
        %924 = vmatprep.subr.mxu0 0.0
        %925 = vmatpush1.msra.mxu0 0.0
        %926 = vmatprep.subr.mxu0 0.0
        %927 = vmatpush1.msra.mxu0 0.0
        %928 = vmatprep.subr.mxu0 0.0
        %929 = vmatpush1.msra.mxu0 0.0
        %930 = vmatprep.subr.mxu0 0.0
        %931 = vmatpush1.msra.mxu0 0.0
        %932 = vmatprep.subr.mxu0 0.0
        %933 = vmatpush1.msra.mxu0 0.0
        %934 = vmatprep.subr.mxu0 0.0
        %935 = vmatpush1.msra.mxu0 0.0
        %936 = vmatprep.subr.mxu0 0.0
        %937 = vmatpush1.msra.mxu0 0.0
        %938 = vmatprep.subr.mxu0 0.0
        %939 = vmatpush1.msra.mxu0 0.0
        %940 = vmatprep.subr.mxu0 0.0
        %941 = vmatpush1.msra.mxu0 0.0
        %942 = vmatprep.subr.mxu0 0.0
        %943 = vmatpush1.msra.mxu0 0.0
        %944 = vmatprep.subr.mxu0 0.0
        %945 = vmatpush1.msra.mxu0 0.0
        %946 = vmatprep.subr.mxu0 0.0
        %947 = vmatpush1.msra.mxu0 0.0
        %948 = vmatprep.subr.mxu0 0.0
        %949 = vmatpush1.msra.mxu0 %v895
        %950 = vmatprep.subr.mxu0 0.0
        %951 = vmatpush1.msra.mxu0 %v894
        %952 = vmatprep.subr.mxu0 0.0
        %953 = vmatpush2.msra.mxu0 0.0
        %954 = vmatprep.subr.mxu0 0.0
        %955 = vmatpush2.msra.mxu0 0.0
        %956 = vmatprep.subr.mxu0 0.0
        %957 = vmatpush2.msra.mxu0 0.0
        %958 = vmatprep.subr.mxu0 0.0
        %959 = vmatpush2.msra.mxu0 0.0
        %960 = vmatprep.subr.mxu0 0.0
        %961 = vmatpush2.msra.mxu0 0.0
        %962 = vmatprep.subr.mxu0 0.0
        %963 = vmatpush2.msra.mxu0 0.0
        %964 = vmatprep.subr.mxu0 0.0
        %965 = vmatpush2.msra.mxu0 0.0
        %966 = vmatprep.subr.mxu0 0.0
        %967 = vmatpush2.msra.mxu0 0.0
        %968 = vmatprep.subr.mxu0 0.0
        %969 = vmatpush2.msra.mxu0 0.0
        %970 = vmatprep.subr.mxu0 0.0
        %971 = vmatpush2.msra.mxu0 0.0
        %972 = vmatprep.subr.mxu0 0.0
        %973 = vmatpush2.msra.mxu0 0.0
        %974 = vmatprep.subr.mxu0 0.0
        %975 = vmatpush2.msra.mxu0 0.0
        %976 = vmatprep.subr.mxu0 0.0
        %977 = vmatpush2.msra.mxu0 0.0
        %978 = vmatprep.subr.mxu0 0.0
        %979 = vmatpush2.msra.mxu0 0.0
        %980 = vmatprep.subr.mxu0 0.0
        %981 = vmatpush2.msra.mxu0 0.0
        %982 = vmatprep.subr.mxu0 0.0
        %983 = vmatpush2.msra.mxu0 0.0
        %984 = vmatprep.mubr.f32.mxu0 0.0
        %985 = vmatmul.mubr.f32.gmra.mxu0 %v897
        %v986 = vpop.f32.mrf.mxu0
        %v987 = vadd.f32 0.0, %v986
        %v988 = vpop.f32.mrf.mxu0
        %989 = vmatprep.mubr.f32.mxu0 0.0
        %990 = vmatmul.mubr.f32.gmra.mxu0 %v900
        %v991 = vpop.f32.mrf.mxu0
        %v992 = vadd.f32 0.0, %v991
        %v993 = vpop.f32.mrf.mxu0
        %994 = vmatprep.mubr.f32.mxu0 0.0
        %995 = vmatmul.mubr.f32.gmra.mxu0 %v903
        %v996 = vpop.f32.mrf.mxu0
        %v997 = vadd.f32 0.0, %v996
        %v998 = vpop.f32.mrf.mxu0
        %999 = vmatprep.mubr.f32.mxu0 0.0
        %1000 = vmatmul.mubr.f32.gmra.mxu0 %v906
        %v1001 = vpop.f32.mrf.mxu0
        %v1002 = vadd.f32 0.0, %v1001
        %v1003 = vpop.f32.mrf.mxu0
        %1004 = vmatprep.mubr.f32.mxu0 0.0
        %1005 = vmatmul.mubr.f32.gmra.mxu0 %v909
        %v1006 = vpop.f32.mrf.mxu0
        %v1007 = vadd.f32 0.0, %v1006
        %v1008 = vpop.f32.mrf.mxu0
        %1009 = vmatprep.mubr.f32.mxu0 0.0
        %1010 = vmatmul.mubr.f32.gmra.mxu0 %v912
        %v1011 = vpop.f32.mrf.mxu0
        %v1012 = vadd.f32 0.0, %v1011
        %v1013 = vpop.f32.mrf.mxu0
        %1014 = vmatprep.mubr.f32.mxu0 0.0
        %1015 = vmatmul.mubr.f32.gmra.mxu0 %v915
        %v1016 = vpop.f32.mrf.mxu0
        %v1017 = vadd.f32 0.0, %v1016
        %v1018 = vpop.f32.mrf.mxu0
        %1019 = vmatprep.mubr.f32.mxu0 0.0
        %1020 = vmatmul.mubr.f32.gmra.mxu0 %v918
        %v1021 = vpop.f32.mrf.mxu0
        %v1022 = vpop.f32.mrf.mxu0
        %1023 = vdwg.mxu0
        %v1024 = vadd.f32 %v878, 0.0
        %v1025 = vadd.f32 %v879, %v987
        %v1026 = vadd.f32 %v880, %v992
        %v1027 = vadd.f32 %v881, %v997
        %v1028 = vadd.f32 %v882, %v1002
        %v1029 = vadd.f32 %v883, %v1007
        %v1030 = vadd.f32 %v884, %v1012
        %v1031 = vadd.f32 %v885, %v1017
        %v1032 = vld [vmem:[%s4] sm:$0xff]
        %v1033 = vsel %vm521, %v419, 0
        %v1035 = vsel %vm521, %v420, 0
        %v1037 = vsel %vm521, %v421, 0
        %v1039 = vsel %vm521, %v422, 0
        %v1041 = vsel %vm521, %v423, 0
        %v1043 = vsel %vm521, %v424, 0
        %v1045 = vsel %vm521, %v425, 0
        %v1047 = vsel %vm521, 0.0, 0
        %1049 = vmatprep.subr.mxu0 0.0
        %1050 = vmatpush1.msra.mxu0 0.0
        %1051 = vmatprep.subr.mxu0 0.0
        %1052 = vmatpush1.msra.mxu0 0.0
        %1053 = vmatprep.subr.mxu0 0.0
        %1054 = vmatpush1.msra.mxu0 0.0
        %1055 = vmatprep.subr.mxu0 0.0
        %1056 = vmatpush1.msra.mxu0 0.0
        %1057 = vmatprep.subr.mxu0 0.0
        %1058 = vmatpush1.msra.mxu0 0.0
        %1059 = vmatprep.subr.mxu0 0.0
        %1060 = vmatpush1.msra.mxu0 0.0
        %1061 = vmatprep.subr.mxu0 0.0
        %1062 = vmatpush1.msra.mxu0 0.0
        %1063 = vmatprep.subr.mxu0 0.0
        %1064 = vmatpush1.msra.mxu0 0.0
        %1065 = vmatprep.subr.mxu0 0.0
        %1066 = vmatpush1.msra.mxu0 0.0
        %1067 = vmatprep.subr.mxu0 0.0
        %1068 = vmatpush1.msra.mxu0 0.0
        %1069 = vmatprep.subr.mxu0 0.0
        %1070 = vmatpush1.msra.mxu0 0.0
        %1071 = vmatprep.subr.mxu0 0.0
        %1072 = vmatpush1.msra.mxu0 0.0
        %1073 = vmatprep.subr.mxu0 0.0
        %1074 = vmatpush1.msra.mxu0 0.0
        %1075 = vmatprep.subr.mxu0 0.0
        %1076 = vmatpush1.msra.mxu0 0.0
        %1077 = vmatprep.subr.mxu0 0.0
        %1078 = vmatpush1.msra.mxu0 0.0
        %1079 = vmatprep.subr.mxu0 0.0
        %1080 = vmatpush1.msra.mxu0 %v1032
        %1081 = vmatprep.subr.mxu0 0.0
        %1082 = vmatpush2.msra.mxu0 0.0
        %1083 = vmatprep.subr.mxu0 0.0
        %1084 = vmatpush2.msra.mxu0 0.0
        %1085 = vmatprep.subr.mxu0 0.0
        %1086 = vmatpush2.msra.mxu0 0.0
        %1087 = vmatprep.subr.mxu0 0.0
        %1088 = vmatpush2.msra.mxu0 0.0
        %1089 = vmatprep.subr.mxu0 0.0
        %1090 = vmatpush2.msra.mxu0 0.0
        %1091 = vmatprep.subr.mxu0 0.0
        %1092 = vmatpush2.msra.mxu0 0.0
        %1093 = vmatprep.subr.mxu0 0.0
        %1094 = vmatpush2.msra.mxu0 0.0
        %1095 = vmatprep.subr.mxu0 0.0
        %1096 = vmatpush2.msra.mxu0 0.0
        %1097 = vmatprep.subr.mxu0 0.0
        %1098 = vmatpush2.msra.mxu0 0.0
        %1099 = vmatprep.subr.mxu0 0.0
        %1100 = vmatpush2.msra.mxu0 0.0
        %1101 = vmatprep.subr.mxu0 0.0
        %1102 = vmatpush2.msra.mxu0 0.0
        %1103 = vmatprep.subr.mxu0 0.0
        %1104 = vmatpush2.msra.mxu0 0.0
        %1105 = vmatprep.subr.mxu0 0.0
        %1106 = vmatpush2.msra.mxu0 0.0
        %1107 = vmatprep.subr.mxu0 0.0
        %1108 = vmatpush2.msra.mxu0 0.0
        %1109 = vmatprep.subr.mxu0 0.0
        %1110 = vmatpush2.msra.mxu0 0.0
        %1111 = vmatprep.subr.mxu0 0.0
        %1112 = vmatpush2.msra.mxu0 0.0
        %1113 = vmatprep.mubr.f32.mxu0 0.0
        %1114 = vmatmul.mubr.f32.gmra.mxu0 %v1033
        %v1115 = vpop.f32.mrf.mxu0
        %v1116 = vadd.f32 0.0, %v1115
        %v1117 = vpop.f32.mrf.mxu0
        %1118 = vmatprep.mubr.f32.mxu0 0.0
        %1119 = vmatmul.mubr.f32.gmra.mxu0 %v1035
        %v1120 = vpop.f32.mrf.mxu0
        %v1121 = vadd.f32 0.0, %v1120
        %v1122 = vpop.f32.mrf.mxu0
        %1123 = vmatprep.mubr.f32.mxu0 0.0
        %1124 = vmatmul.mubr.f32.gmra.mxu0 %v1037
        %v1125 = vpop.f32.mrf.mxu0
        %v1126 = vadd.f32 0.0, %v1125
        %v1127 = vpop.f32.mrf.mxu0
        %1128 = vmatprep.mubr.f32.mxu0 0.0
        %1129 = vmatmul.mubr.f32.gmra.mxu0 %v1039
        %v1130 = vpop.f32.mrf.mxu0
        %v1131 = vadd.f32 0.0, %v1130
        %v1132 = vpop.f32.mrf.mxu0
        %1133 = vmatprep.mubr.f32.mxu0 0.0
        %1134 = vmatmul.mubr.f32.gmra.mxu0 %v1041
        %v1135 = vpop.f32.mrf.mxu0
        %v1136 = vadd.f32 0.0, %v1135
        %v1137 = vpop.f32.mrf.mxu0
        %1138 = vmatprep.mubr.f32.mxu0 0.0
        %1139 = vmatmul.mubr.f32.gmra.mxu0 %v1043
        %v1140 = vpop.f32.mrf.mxu0
        %v1141 = vadd.f32 0.0, %v1140
        %v1142 = vpop.f32.mrf.mxu0
        %1143 = vmatprep.mubr.f32.mxu0 0.0
        %1144 = vmatmul.mubr.f32.gmra.mxu0 %v1045
        %v1145 = vpop.f32.mrf.mxu0
        %v1146 = vadd.f32 0.0, %v1145
        %v1147 = vpop.f32.mrf.mxu0
        %1148 = vmatprep.mubr.f32.mxu0 0.0
        %1149 = vmatmul.mubr.f32.gmra.mxu0 %v1047
        %v1150 = vpop.f32.mrf.mxu0
        %v1151 = vpop.f32.mrf.mxu0
        %1152 = vdwg.mxu0
        %v1160 = vrot.slane %v1116, 7
        %v1161 = vrot.slane %v1121, 7
        %v1162 = vrot.slane %v1126, 7
        %v1163 = vrot.slane %v1131, 7
        %v1164 = vrot.slane %v1136, 7
        %v1165 = vrot.slane %v1141, 7
        %v1166 = vrot.slane %v1146, 7
        %v1174 = vsel %vm869, 0.0, %v1160
        %v1175 = vsel %vm869, 0.0, %v1161
        %v1176 = vsel %vm869, 0.0, %v1162
        %v1177 = vsel %vm869, 0.0, %v1163
        %v1178 = vsel %vm869, 0.0, %v1164
        %v1179 = vsel %vm869, 0.0, %v1165
        %v1180 = vsel %vm869, 0.0, %v1166
        %v1181 = vadd.f32 %v1024, 0.0
        %v1182 = vadd.f32 %v1025, %v1174
        %v1183 = vadd.f32 %v1026, %v1175
        %v1184 = vadd.f32 %v1027, %v1176
        %v1185 = vadd.f32 %v1028, %v1177
        %v1186 = vadd.f32 %v1029, %v1178
        %v1187 = vadd.f32 %v1030, %v1179
        %v1188 = vadd.f32 %v1031, %v1180
        %v1189 = vld [vmem:[%s5] sm:$0x1]
        %v1191 = vlaneseq
        %v1192 = vshrl.u32 %v1191, 7
        %v1193 = vsub.s32 0, %v1192
        %v1194 = vrot.slane %v1189, %v1193
        %v1196 = vadd.f32 %v1181, %v1194
        %v1197 = vadd.f32 %v1182, %v1194
        %v1198 = vadd.f32 %v1183, %v1194
        %v1199 = vadd.f32 %v1184, %v1194
        %v1200 = vadd.f32 %v1185, %v1194
        %v1201 = vadd.f32 %v1186, %v1194
        %v1202 = vadd.f32 %v1187, %v1194
        %v1203 = vadd.f32 %v1188, %v1194
        %v1204 = vsub.f32 0.0, %v1196
        %v1205 = vsub.f32 0.0, %v1197
        %v1206 = vsub.f32 0.0, %v1198
        %v1207 = vsub.f32 0.0, %v1199
        %v1208 = vsub.f32 0.0, %v1200
        %v1209 = vsub.f32 0.0, %v1201
        %v1210 = vsub.f32 0.0, %v1202
        %v1211 = vsub.f32 0.0, %v1203
        %v1212 = vmul.f32 %v1204, 1.442695
        %v1213 = vpow.pop %v1212
        %v1214 = vmul.f32 %v1205, 1.442695
        %v1215 = vpow.pop %v1214
        %v1216 = vmul.f32 %v1206, 1.442695
        %v1217 = vpow.pop %v1216
        %v1218 = vmul.f32 %v1207, 1.442695
        %v1219 = vpow.pop %v1218
        %v1220 = vmul.f32 %v1208, 1.442695
        %v1221 = vpow.pop %v1220
        %v1222 = vmul.f32 %v1209, 1.442695
        %v1223 = vpow.pop %v1222
        %v1224 = vmul.f32 %v1210, 1.442695
        %v1225 = vpow.pop %v1224
        %v1226 = vmul.f32 %v1211, 1.442695
        %v1227 = vpow.pop %v1226
        %v1228 = vadd.f32 %v1213, 1.0
        %v1229 = vadd.f32 %v1215, 1.0
        %v1230 = vadd.f32 %v1217, 1.0
        %v1231 = vadd.f32 %v1219, 1.0
        %v1232 = vadd.f32 %v1221, 1.0
        %v1233 = vadd.f32 %v1223, 1.0
        %v1234 = vadd.f32 %v1225, 1.0
        %v1235 = vadd.f32 %v1227, 1.0
        %v1236 = vrcp.pop %v1228
        %v1237 = vrcp.pop %v1229
        %v1238 = vrcp.pop %v1230
        %v1239 = vrcp.pop %v1231
        %v1240 = vrcp.pop %v1232
        %v1241 = vrcp.pop %v1233
        %v1242 = vrcp.pop %v1234
        %v1243 = vrcp.pop %v1235
        %v1244 = vmul.f32 %v1196, %v1236
        %v1245 = vmul.f32 %v1197, %v1237
        %v1246 = vmul.f32 %v1198, %v1238
        %v1247 = vmul.f32 %v1199, %v1239
        %v1248 = vmul.f32 %v1200, %v1240
        %v1249 = vmul.f32 %v1201, %v1241
        %v1250 = vmul.f32 %v1202, %v1242
        %v1251 = vmul.f32 %v1203, %v1243
        %1252 = vst.msk [vmem:[%s247] sm:$0xff] %vm552, %v1244
        %1253 = vst.msk [vmem:[%s247 + $0x8] sm:$0xff] %vm552, %v1245
        %1254 = vst.msk [vmem:[%s247 + $0x10] sm:$0xff] %vm552, %v1246
        %1255 = vst.msk [vmem:[%s247 + $0x18] sm:$0xff] %vm552, %v1247
        %1256 = vst.msk [vmem:[%s247 + $0x20] sm:$0xff] %vm552, %v1248
        %1257 = vst.msk [vmem:[%s247 + $0x28] sm:$0xff] %vm552, %v1249
        %1258 = vst.msk [vmem:[%s247 + $0x30] sm:$0xff] %vm552, %v1250
        %1259 = vst.msk [vmem:[%s247 + $0x38] sm:$0xff] %vm552, %v1251
        %s1260 = sand.u32 %s159, 1
        %s1261 = scalar_lea.sflag [#allocation3], %s1260
        %s1262 = sand.u32 %s159, 1
        %s1263 = smul.addr %s1262, 64
        %s1264 = scalar_lea.vmem [#allocation2], %s1263
        // Predicated region
        $region45: #{aconv_forward.1} parent=43 // pred_check
          %p1265 = pneg %p169
        $region46: #{aconv_forward.1} parent=43 // pred_check_branch
          %1267 = sbr.rel (%p1265) target = $region48
        $region47: #{aconv_forward.1} parent=43 // pred_region
          %s1269 = ssub.s32 1024, 1024
          %1270 = vsyncadd %s1261, %s1269
          %s1271 = smul.addr %s20, 8
          %s1272 = smul.addr %s1271, 128
          %s1273 = scalar_lea.hbm %s6, %s1272
          %s1274 = sshll.u32 %s1264, 4
          %s1275 = int_to_ptr.vmem [resolvable:$true] %s1274
          %1280 = dma.vmem_to_hbm [thread:$0]  %s1275, 1024, %s1273, %s1261, 128, 128, 8
        $region48: #{aconv_forward.1} parent=43 // pred_fallthru
          _
      $region44: #{aconv_forward.1} parent=5 // pred_fallthru
        _
      %p1281 = scmp.le.s32.totalorder 2, %s15
      // Predicated region
      $region49: #{aconv_forward.1} parent=5 // pred_check
        %p1282 = pneg %p1281
      $region50: #{aconv_forward.1} parent=5 // pred_check_branch
        %1284 = sbr.rel (%p1282) target = $region52
      $region51: #{aconv_forward.1} parent=5 // pred_region
        %s1285 = ssub.s32 %s15, 2
        // Predicated region
        $region53: #{aconv_forward.1} parent=51 // pred_check
          %p1286 = pneg %p175
        $region54: #{aconv_forward.1} parent=51 // pred_check_branch
          %1288 = sbr.rel (%p1286) target = $region56
        $region55: #{aconv_forward.1} parent=51 // pred_region
          %s1289 = sand.u32 %s160, 1
          %s1290 = scalar_lea.sflag [#allocation3], %s1289
          %s1291 = sand.u32 %s160, 1
          %s1292 = smul.addr %s1291, 64
          %s1293 = scalar_lea.vmem [#allocation2], %s1292
          %1294 = dma.done %s1290, 1024
        $region56: #{aconv_forward.1} parent=51 // pred_fallthru
          _
      $region52: #{aconv_forward.1} parent=5 // pred_fallthru
        _
    $region6: #{aconv_forward.1} parent=1 // loop_footer
      %s19 = sadd.s32 1, %s15
    $region7: #{aconv_forward.1} parent=1 // loop_footer_branch
      %14 = sbr.rel target = $region3
    $region8: #{aconv_forward.1} parent=1 // loop_exit
      _
    %1295 = vsyncpa [#allocation3], 1
    %s1296 = scalar_lea.sflag [#allocation3], 1
    %1297 = vsyncpa %s1296, 1

</llo_original>
